<compile_context>
chip_gen: v7x
topology: tpu7x:2x2x1
jax: 0.10.0
libtpu: 0.0.40
codegen_flags: <defaults>
</compile_context>

<pallas_src>
import functools

import jax
import jax.numpy as jnp
from jax.experimental import pallas as pl
from jax.experimental.pallas import tpu as pltpu

EPSILON_STD = 0.01


def _round_up(x, m):
    return ((x + m - 1) // m) * m


def _vae_kernel(do_sample, H, Z, D, out_w, *refs):
    if do_sample:
        x_ref, eps_ref, wenc_ref, wmv_ref, wdec_ref, bias_ref, out_ref = refs
    else:
        x_ref, wenc_ref, wmv_ref, wdec_ref, bias_ref, out_ref = refs

    bias = bias_ref[...]                        # (3, d_max) f32 — single load
    b_enc = bias[0:1, :H]
    b_muvar = bias[1:2, :2 * Z]
    b_dec = bias[2:3, :D]

    # ----- encoder: linear + relu (bf16 MXU, f32 accumulate / elementwise) -----
    x = x_ref[...].astype(jnp.bfloat16)         # in-kernel cast (hides under MXU/DMA)
    h = jnp.dot(x, wenc_ref[...], preferred_element_type=jnp.float32)
    h = jnp.maximum(h + b_enc, 0.0)

    # ----- fused MeanVarianceSkewHead: one (H, 2Z) matmul -> [mu | log_var] -----
    muvar = jnp.dot(h.astype(jnp.bfloat16), wmv_ref[...],
                    preferred_element_type=jnp.float32) + b_muvar
    mu = muvar[:, :Z]
    log_var = muvar[:, Z:]

    # ----- reparameterization: z = mu + eps_std * N(0,1) * exp(0.5*log_var) -----
    if do_sample:
        eps = eps_ref[...]
        z = mu + (EPSILON_STD * eps) * jnp.exp(0.5 * log_var)
    else:
        z = mu

    # ----- decoder: z -> logits over (S*A) -----
    # TODO(synk): the PyTorch decoder is teacher-forced via PolicyFromTarget
    # (autoregressive); no clean Pallas equivalent, so the decoder here is a
    # plain linear map z -> logits.
    logits = jnp.dot(z.astype(jnp.bfloat16), wdec_ref[...],
                     preferred_element_type=jnp.float32) + b_dec

    # ----- single lane-dense output slab: [logits | mu | log_var | zero pad] -----
    pieces = [logits, muvar]
    pad = out_w - D - 2 * Z
    if pad > 0:
        pieces.append(jnp.zeros((logits.shape[0], pad), jnp.float32))
    out_ref[...] = jnp.concatenate(pieces, axis=1)


def pack_params(params):
    """One-time parameter packing; call when params change, not per step."""
    H = params["w_enc"].shape[1]
    Z = params["w_mu"].shape[1]
    D = params["w_dec"].shape[1]
    d_max = max(H, 2 * Z, D)

    def _pad_row(b):
        b = jnp.reshape(b, (1, -1)).astype(jnp.float32)
        return jnp.pad(b, ((0, 0), (0, d_max - b.shape[1])))

    return {
        "w_enc": params["w_enc"].astype(jnp.bfloat16),                       # (D, H)
        "w_muvar": jnp.concatenate([params["w_mu"], params["w_lv"]],
                                   axis=1).astype(jnp.bfloat16),             # (H, 2Z)
        "w_dec": params["w_dec"].astype(jnp.bfloat16),                       # (Z, D)
        "bias": jnp.concatenate([
            _pad_row(params["b_enc"]),
            _pad_row(jnp.concatenate([jnp.ravel(params["b_mu"]),
                                      jnp.ravel(params["b_lv"])])),
            _pad_row(params["b_dec"]),
        ], axis=0),                                                          # (3, d_max) f32
    }


def vae_head_forward(x, packed, *, key=None, sample_z=True, training=True,
                     tile_b=128):
    """Mirrors VariationalAutoEncoderHead.forward (return_mu_log_var=True)."""
    B, S, A = x.shape
    D = S * A
    w_enc, w_muvar, w_dec, bias = (packed["w_enc"], packed["w_muvar"],
                                   packed["w_dec"], packed["bias"])
    H = w_enc.shape[1]
    Z = w_muvar.shape[1] // 2
    assert w_enc.shape[0] == D and w_dec.shape == (Z, D)
    do_sample = bool(sample_z and training)

    # --- batch padding / tiling (bf16 sublane-pack aligned, 1-D grid) ---
    tile_b = min(int(tile_b), _round_up(B, 16))
    tile_b = max(16, _round_up(tile_b, 16))
    B_pad = _round_up(B, tile_b)

    x_flat = x.reshape(B, D)                    # stays f32; cast in-kernel
    if B_pad != B:
        x_flat = jnp.pad(x_flat, ((0, B_pad - B), (0, 0)))

    out_w = _round_up(D + 2 * Z, 128)           # lane-dense merged output width

    in_arrays = [x_flat]
    in_specs = [pl.BlockSpec((tile_b, D), lambda i: (i, 0))]
    if do_sample:
        if key is None:
            key = jax.random.PRNGKey(0)
        eps = jax.random.normal(key, (B, Z), jnp.float32)
        if B_pad != B:
            eps = jnp.pad(eps, ((0, B_pad - B), (0, 0)))
        in_arrays.append(eps)
        in_specs.append(pl.BlockSpec((tile_b, Z), lambda i: (i, 0)))
    in_arrays += [w_enc, w_muvar, w_dec, bias]
    in_specs += [
        pl.BlockSpec((D, H), lambda i: (0, 0)),          # w_enc     (resident)
        pl.BlockSpec((H, 2 * Z), lambda i: (0, 0)),      # w_mu|w_lv (resident)
        pl.BlockSpec((Z, D), lambda i: (0, 0)),          # w_dec     (resident)
        pl.BlockSpec(bias.shape, lambda i: (0, 0)),      # bias slab (resident)
    ]

    grid = (B_pad // tile_b,)
    # Small grids: don't shard a 1-2 step toy grid across v7x's two cores.
    semantics = ("parallel",) if grid[0] > 2 else ("arbitrary",)

    kernel = functools.partial(_vae_kernel, do_sample, H, Z, D, out_w)

    out = pl.pallas_call(
        kernel,
        out_shape=jax.ShapeDtypeStruct((B_pad, out_w), jnp.float32),
        grid=grid,
        in_specs=in_specs,
        out_specs=pl.BlockSpec((tile_b, out_w), lambda i: (i, 0)),
        compiler_params=pltpu.CompilerParams(dimension_semantics=semantics),
    )(*in_arrays)

    logits = out[:B, :D].reshape(B, S, A)
    mu = out[:B, D:D + Z]
    log_var = out[:B, D + Z:D + 2 * Z]
    return logits, mu, log_var


def vae_head_reference(x, params, *, eps=None):
    """Pure-JAX f32 reference of the same forward pass."""
    B = x.shape[0]
    x_flat = x.reshape(B, -1)
    h = jnp.maximum(x_flat @ params["w_enc"] + params["b_enc"], 0.0)
    mu = h @ params["w_mu"] + params["b_mu"]
    log_var = h @ params["w_lv"] + params["b_lv"]
    z = mu if eps is None else mu + EPSILON_STD * eps * jnp.exp(0.5 * log_var)
    logits = z @ params["w_dec"] + params["b_dec"]
    return logits.reshape(x.shape), mu, log_var


def init_params(key, seq_len, num_actions, hidden, z_size):
    k = jax.random.split(key, 6)
    in_dim = seq_len * num_actions
    scale = 0.02
    return {
        "w_enc": scale * jax.random.normal(k[0], (in_dim, hidden), jnp.float32),
        "b_enc": jnp.zeros((hidden,), jnp.float32),
        "w_mu": scale * jax.random.normal(k[1], (hidden, z_size), jnp.float32),
        "b_mu": jnp.zeros((z_size,), jnp.float32),
        "w_lv": scale * jax.random.normal(k[2], (hidden, z_size), jnp.float32),
        "b_lv": jnp.zeros((z_size,), jnp.float32),
        "w_dec": scale * jax.random.normal(k[3], (z_size, in_dim), jnp.float32),
        "b_dec": jnp.zeros((in_dim,), jnp.float32),
    }


if __name__ == "__main__":
    B, S, A = 128, 8, 8        # batch x seq x num_actions (one-hot)
    H, Z = 32, 16              # encoder hidden, latent z_size

    root = jax.random.PRNGKey(0)
    k_param, k_act, k_eps = jax.random.split(root, 3)

    params = init_params(k_param, S, A, H, Z)
    packed = pack_params(params)             # one-time packing (off the hot path)

    # deterministic one-hot input x: batch_size x seq_len x feature_len
    actions = jax.random.randint(k_act, (B, S), 0, A)
    x = jax.nn.one_hot(actions, A, dtype=jnp.float32)

    fwd_train = jax.jit(functools.partial(vae_head_forward,
                                          sample_z=True, training=True, tile_b=128))
    fwd_eval = jax.jit(functools.partial(vae_head_forward,
                                         sample_z=True, training=False, tile_b=128))

    # training path: reparameterization sample (eps generated in wrapper, fused under jit)
    output, mu, log_var = fwd_train(x, packed, key=k_eps)
    jax.block_until_ready((output, mu, log_var))
    assert output.shape == (B, S, A)
    assert mu.shape == (B, Z) and log_var.shape == (B, Z)
    assert bool(jnp.all(jnp.isfinite(output)))

    # eval path: z = mu, no eps input / no sampling work at all
    output_e, mu_e, log_var_e = fwd_eval(x, packed)
    jax.block_until_ready((output_e, mu_e, log_var_e))
    assert output_e.shape == (B, S, A)

    # numeric check against the pure-JAX f32 reference (bf16 MXU tolerance)
    ref_out, ref_mu, ref_lv = vae_head_reference(x, params)
    assert bool(jnp.allclose(mu_e, ref_mu, atol=5e-3))
    assert bool(jnp.allclose(log_var_e, ref_lv, atol=5e-3))
    assert bool(jnp.allclose(output_e, ref_out, atol=5e-3))

    print("KERNEL_OK")
</pallas_src>

<mosaic_0001>
module attributes {stable_mosaic.version = 11 : i64} {
  func.func @_vae_kernel(%arg0: i32, %arg1: memref<128x64xf32, #tpu.memory_space<vmem>>, %arg2: memref<128x16xf32, #tpu.memory_space<vmem>>, %arg3: memref<64x32xbf16, #tpu.memory_space<vmem>>, %arg4: memref<32x32xbf16, #tpu.memory_space<vmem>>, %arg5: memref<16x64xbf16, #tpu.memory_space<vmem>>, %arg6: memref<3x64xf32, #tpu.memory_space<vmem>>, %arg7: memref<128x128xf32, #tpu.memory_space<vmem>>) attributes {dimension_semantics = [#tpu.dimension_semantics<arbitrary>], iteration_bounds = array<i64: 1>, scalar_prefetch = 0 : i64, scratch_operands = 0 : i64, tpu.core_type = #tpu.core_type<tc>, window_params = [{transform_indices = @transform_0, window_bounds = array<i64: 128, 64>}, {transform_indices = @transform_1, window_bounds = array<i64: 128, 16>}, {pipeline_mode = #tpu.pipeline_mode<synchronous>, transform_indices = @transform_2, window_bounds = array<i64: 64, 32>}, {pipeline_mode = #tpu.pipeline_mode<synchronous>, transform_indices = @transform_3, window_bounds = array<i64: 32, 32>}, {pipeline_mode = #tpu.pipeline_mode<synchronous>, transform_indices = @transform_4, window_bounds = array<i64: 16, 64>}, {pipeline_mode = #tpu.pipeline_mode<synchronous>, transform_indices = @transform_5, window_bounds = array<i64: 3, 64>}, {transform_indices = @transform_6, window_bounds = array<i64: 128, 128>}]} {
    %c0 = arith.constant 0 : index
    %c0_0 = arith.constant 0 : index
    %0 = vector.load %arg6[%c0, %c0_0] : memref<3x64xf32, #tpu.memory_space<vmem>>, vector<3x64xf32>
    %1 = vector.extract_strided_slice %0 {offsets = [0, 0], sizes = [1, 32], strides = [1, 1]} : vector<3x64xf32> to vector<1x32xf32>
    %2 = vector.extract_strided_slice %0 {offsets = [1, 0], sizes = [1, 32], strides = [1, 1]} : vector<3x64xf32> to vector<1x32xf32>
    %3 = vector.extract_strided_slice %0 {offsets = [2, 0], sizes = [1, 64], strides = [1, 1]} : vector<3x64xf32> to vector<1x64xf32>
    %c0_1 = arith.constant 0 : index
    %c0_2 = arith.constant 0 : index
    %4 = vector.load %arg1[%c0_1, %c0_2] : memref<128x64xf32, #tpu.memory_space<vmem>>, vector<128x64xf32>
    %5 = arith.truncf %4 : vector<128x64xf32> to vector<128x64xbf16>
    %c0_3 = arith.constant 0 : index
    %c0_4 = arith.constant 0 : index
    %6 = vector.load %arg3[%c0_3, %c0_4] : memref<64x32xbf16, #tpu.memory_space<vmem>>, vector<64x32xbf16>
    %cst = arith.constant dense<0.000000e+00> : vector<128x32xf32>
    %7 = tpu.matmul %5, %6, %cst {dimension_numbers = #tpu.dot_dimension_numbers<[1], [0], [0], [1], [0, 0, 1, 1], [], []>} : vector<128x64xbf16>, vector<64x32xbf16>, vector<128x32xf32> -> vector<128x32xf32>
    %8 = vector.broadcast %1 : vector<1x32xf32> to vector<128x32xf32>
    %9 = arith.addf %7, %8 : vector<128x32xf32>
    %cst_5 = arith.constant 0.000000e+00 : f32
    %10 = vector.broadcast %cst_5 : f32 to vector<128x32xf32>
    %11 = arith.maximumf %9, %10 : vector<128x32xf32>
    %12 = arith.truncf %11 : vector<128x32xf32> to vector<128x32xbf16>
    %c0_6 = arith.constant 0 : index
    %c0_7 = arith.constant 0 : index
    %13 = vector.load %arg4[%c0_6, %c0_7] : memref<32x32xbf16, #tpu.memory_space<vmem>>, vector<32x32xbf16>
    %cst_8 = arith.constant dense<0.000000e+00> : vector<128x32xf32>
    %14 = tpu.matmul %12, %13, %cst_8 {dimension_numbers = #tpu.dot_dimension_numbers<[1], [0], [0], [1], [0, 0, 1, 1], [], []>} : vector<128x32xbf16>, vector<32x32xbf16>, vector<128x32xf32> -> vector<128x32xf32>
    %15 = vector.broadcast %2 : vector<1x32xf32> to vector<128x32xf32>
    %16 = arith.addf %14, %15 : vector<128x32xf32>
    %17 = vector.extract_strided_slice %16 {offsets = [0, 0], sizes = [128, 16], strides = [1, 1]} : vector<128x32xf32> to vector<128x16xf32>
    %18 = vector.extract_strided_slice %16 {offsets = [0, 16], sizes = [128, 16], strides = [1, 1]} : vector<128x32xf32> to vector<128x16xf32>
    %c0_9 = arith.constant 0 : index
    %c0_10 = arith.constant 0 : index
    %19 = vector.load %arg2[%c0_9, %c0_10] : memref<128x16xf32, #tpu.memory_space<vmem>>, vector<128x16xf32>
    %cst_11 = arith.constant 0.00999999977 : f32
    %20 = vector.broadcast %cst_11 : f32 to vector<128x16xf32>
    %21 = arith.mulf %20, %19 : vector<128x16xf32>
    %cst_12 = arith.constant 5.000000e-01 : f32
    %22 = vector.broadcast %cst_12 : f32 to vector<128x16xf32>
    %23 = arith.mulf %22, %18 : vector<128x16xf32>
    %24 = math.exp %23 : vector<128x16xf32>
    %25 = arith.mulf %21, %24 : vector<128x16xf32>
    %26 = arith.addf %17, %25 : vector<128x16xf32>
    %27 = arith.truncf %26 : vector<128x16xf32> to vector<128x16xbf16>
    %c0_13 = arith.constant 0 : index
    %c0_14 = arith.constant 0 : index
    %28 = vector.load %arg5[%c0_13, %c0_14] : memref<16x64xbf16, #tpu.memory_space<vmem>>, vector<16x64xbf16>
    %cst_15 = arith.constant dense<0.000000e+00> : vector<128x64xf32>
    %29 = tpu.matmul %27, %28, %cst_15 {dimension_numbers = #tpu.dot_dimension_numbers<[1], [0], [0], [1], [0, 0, 1, 1], [], []>} : vector<128x16xbf16>, vector<16x64xbf16>, vector<128x64xf32> -> vector<128x64xf32>
    %30 = vector.broadcast %3 : vector<1x64xf32> to vector<128x64xf32>
    %31 = arith.addf %29, %30 : vector<128x64xf32>
    %cst_16 = arith.constant 0.000000e+00 : f32
    %32 = vector.broadcast %cst_16 : f32 to vector<128x32xf32>
    %33 = tpu.concatenate %31, %16, %32 in 1 : vector<128x64xf32>, vector<128x32xf32>, vector<128x32xf32> -> vector<128x128xf32>
    %c0_17 = arith.constant 0 : index
    %c0_18 = arith.constant 0 : index
    %34 = vector.load %arg7[%c0_17, %c0_18] : memref<128x128xf32, #tpu.memory_space<vmem>>, vector<128x128xf32>
    tpu.vector_store %arg7[%c0_17, %c0_18], %33 {strides = array<i32>} : memref<128x128xf32, #tpu.memory_space<vmem>>, vector<128x128xf32>,
    return
  }
  func.func @transform_0(%arg0: i32) -> (i32, i32) {
    %c0_i32 = arith.constant 0 : i32
    %c0_i32_0 = arith.constant 0 : i32
    return %arg0, %c0_i32 : i32, i32
  }
  func.func @transform_1(%arg0: i32) -> (i32, i32) {
    %c0_i32 = arith.constant 0 : i32
    %c0_i32_0 = arith.constant 0 : i32
    return %arg0, %c0_i32 : i32, i32
  }
  func.func @transform_2(%arg0: i32) -> (i32, i32) {
    %c0_i32 = arith.constant 0 : i32
    %c0_i32_0 = arith.constant 0 : i32
    %c0_i32_1 = arith.constant 0 : i32
    return %c0_i32, %c0_i32_0 : i32, i32
  }
  func.func @transform_3(%arg0: i32) -> (i32, i32) {
    %c0_i32 = arith.constant 0 : i32
    %c0_i32_0 = arith.constant 0 : i32
    %c0_i32_1 = arith.constant 0 : i32
    return %c0_i32, %c0_i32_0 : i32, i32
  }
  func.func @transform_4(%arg0: i32) -> (i32, i32) {
    %c0_i32 = arith.constant 0 : i32
    %c0_i32_0 = arith.constant 0 : i32
    %c0_i32_1 = arith.constant 0 : i32
    return %c0_i32, %c0_i32_0 : i32, i32
  }
  func.func @transform_5(%arg0: i32) -> (i32, i32) {
    %c0_i32 = arith.constant 0 : i32
    %c0_i32_0 = arith.constant 0 : i32
    %c0_i32_1 = arith.constant 0 : i32
    return %c0_i32, %c0_i32_0 : i32, i32
  }
  func.func @transform_6(%arg0: i32) -> (i32, i32) {
    %c0_i32 = arith.constant 0 : i32
    %c0_i32_0 = arith.constant 0 : i32
    return %arg0, %c0_i32 : i32, i32
  }
}

</mosaic_0001>

<llo_original>
// kernel: vae_head_forward.1
$region0: #{vae_head_forward.1}
  #allocation0 [shape = 'u32[]', space=smem, size = 0x4, offset = 0x4, fixed_abs, tag = 'smem constant byte address 0x4 - core index']
  #allocation1 [shape = 'u32[144,128]{1,0:T(1,128)}', space=vmem, size = 0x12000, scoped, tag = 'internal scratch']
  %s0 = inlined_call_operand.vmem [shape: f32[128,64], index: 0, kind: input, shape index: {}]
  %s1 = inlined_call_operand.vmem [shape: f32[128,16], index: 1, kind: input, shape index: {}]
  %s2 = inlined_call_operand.vmem [shape: bf16[64,32], index: 2, kind: input, shape index: {}]
  %s3 = inlined_call_operand.vmem [shape: bf16[32,32], index: 3, kind: input, shape index: {}]
  %s4 = inlined_call_operand.vmem [shape: bf16[16,64], index: 4, kind: input, shape index: {}]
  %s5 = inlined_call_operand.vmem [shape: f32[3,64], index: 5, kind: input, shape index: {}]
  %s6 = inlined_call_operand.vmem [shape: f32[128,128], index: 6, kind: output, shape index: {}]
  %s7 = sld [smem:[#allocation0]]
  $region34: #{vae_head_forward.1} parent=0
    _
  %s9 = ssub.s32 1, %s7
  %s10 = scalar_select 0, %s9, %s7
  // Predicated region
  $region2: #{vae_head_forward.1} parent=0 // pred_check
    _
  $region3: #{vae_head_forward.1} parent=0 // pred_check_branch
    %12 = sbr.rel (0) target = $region5
  $region4: #{vae_head_forward.1} parent=0 // pred_region
    _
  $region5: #{vae_head_forward.1} parent=0 // pred_fallthru
    _
  // Predicated region
  $region6: #{vae_head_forward.1} parent=0 // pred_check
    _
  $region7: #{vae_head_forward.1} parent=0 // pred_check_branch
    %14 = sbr.rel (0) target = $region9
  $region8: #{vae_head_forward.1} parent=0 // pred_region
    _
  $region9: #{vae_head_forward.1} parent=0 // pred_fallthru
    _
  // Predicated region
  $region10: #{vae_head_forward.1} parent=0 // pred_check
    _
  $region11: #{vae_head_forward.1} parent=0 // pred_check_branch
    %16 = sbr.rel (0) target = $region13
  $region12: #{vae_head_forward.1} parent=0 // pred_region
    _
  $region13: #{vae_head_forward.1} parent=0 // pred_fallthru
    _
  // Predicated region
  $region14: #{vae_head_forward.1} parent=0 // pred_check
    _
  $region15: #{vae_head_forward.1} parent=0 // pred_check_branch
    %18 = sbr.rel (0) target = $region17
  $region16: #{vae_head_forward.1} parent=0 // pred_region
    _
  $region17: #{vae_head_forward.1} parent=0 // pred_fallthru
    _
  // Predicated region
  $region18: #{vae_head_forward.1} parent=0 // pred_check
    _
  $region19: #{vae_head_forward.1} parent=0 // pred_check_branch
    %20 = sbr.rel (0) target = $region21
  $region20: #{vae_head_forward.1} parent=0 // pred_region
    _
  $region21: #{vae_head_forward.1} parent=0 // pred_fallthru
    _
  // Predicated region
  $region22: #{vae_head_forward.1} parent=0 // pred_check
    _
  $region23: #{vae_head_forward.1} parent=0 // pred_check_branch
    %22 = sbr.rel (0) target = $region25
  $region24: #{vae_head_forward.1} parent=0 // pred_region
    _
  $region25: #{vae_head_forward.1} parent=0 // pred_fallthru
    _
  %v24 = vld [vmem:[%s5] sm:$0x7]
  %v25 = vld [vmem:[%s0] sm:$0xff]
  %v26 = vld [vmem:[%s0 + $0x8] sm:$0xff]
  %v27 = vld [vmem:[%s0 + $0x10] sm:$0xff]
  %v28 = vld [vmem:[%s0 + $0x18] sm:$0xff]
  %v29 = vld [vmem:[%s0 + $0x20] sm:$0xff]
  %v30 = vld [vmem:[%s0 + $0x28] sm:$0xff]
  %v31 = vld [vmem:[%s0 + $0x30] sm:$0xff]
  %v32 = vld [vmem:[%s0 + $0x38] sm:$0xff]
  %v33 = vld [vmem:[%s0 + $0x40] sm:$0xff]
  %v34 = vld [vmem:[%s0 + $0x48] sm:$0xff]
  %v35 = vld [vmem:[%s0 + $0x50] sm:$0xff]
  %v36 = vld [vmem:[%s0 + $0x58] sm:$0xff]
  %v37 = vld [vmem:[%s0 + $0x60] sm:$0xff]
  %v38 = vld [vmem:[%s0 + $0x68] sm:$0xff]
  %v39 = vld [vmem:[%s0 + $0x70] sm:$0xff]
  %v40 = vld [vmem:[%s0 + $0x78] sm:$0xff]
  %v41 = vpack.c.bf16 %v26, %v25
  %v42 = vpack.c.bf16 %v28, %v27
  %v43 = vpack.c.bf16 %v30, %v29
  %v44 = vpack.c.bf16 %v32, %v31
  %v45 = vpack.c.bf16 %v34, %v33
  %v46 = vpack.c.bf16 %v36, %v35
  %v47 = vpack.c.bf16 %v38, %v37
  %v48 = vpack.c.bf16 %v40, %v39
  %v49 = vld [vmem:[%s2] sm:$0xf]
  %v50 = vld [vmem:[%s2 + $0x4] sm:$0xf]
  %v51 = vld [vmem:[%s2 + $0x8] sm:$0xf]
  %v52 = vld [vmem:[%s2 + $0xc] sm:$0xf]
  %v53 = vld [vmem:[%s2 + $0x10] sm:$0xf]
  %v54 = vld [vmem:[%s2 + $0x14] sm:$0xf]
  %v55 = vld [vmem:[%s2 + $0x18] sm:$0xf]
  %v56 = vld [vmem:[%s2 + $0x1c] sm:$0xf]
  %v57 = vlaneseq
  %v58 = vshrl.u32 %v57, 7
  %v59 = vsub.s32 0, %v58
  %v60 = vrot.slane %v24, %v59
  %v69 = vunpack.c.l.b16 %v49
  %v70 = vunpack.c.l.b16 %v50
  %v71 = vunpack.c.l.b16 %v51
  %v72 = vunpack.c.l.b16 %v52
  %v73 = vunpack.c.l.b16 %v53
  %v74 = vunpack.c.l.b16 %v54
  %v75 = vunpack.c.l.b16 %v55
  %v76 = vunpack.c.l.b16 %v56
  %v77 = vpack.c.b16 %v70, %v69
  %v78 = vpack.c.b16 %v72, %v71
  %v79 = vpack.c.b16 %v74, %v73
  %v80 = vpack.c.b16 %v76, %v75
  %vm85 = vcmask 523264
  %v87 = vsel %vm85, %v41, 0
  %v90 = vsel %vm85, %v42, 0
  %v93 = vsel %vm85, %v43, 0
  %v96 = vsel %vm85, %v44, 0
  %v99 = vsel %vm85, %v45, 0
  %v102 = vsel %vm85, %v46, 0
  %v105 = vsel %vm85, %v47, 0
  %v108 = vsel %vm85, %v48, 0
  %110 = vmatprep.subr.bf16.mxu0 0
  %111 = vmatpush1.bf16.msra.mxu0 %v77
  %112 = vmatprep.subr.bf16.mxu0 0
  %113 = vmatpush1.bf16.msra.mxu0 %v78
  %114 = vmatprep.subr.bf16.mxu0 0
  %115 = vmatpush1.bf16.msra.mxu0 %v79
  %116 = vmatprep.subr.bf16.mxu0 0
  %117 = vmatpush1.bf16.msra.mxu0 %v80
  %118 = vmatprep.subr.bf16.mxu0 0
  %119 = vmatpush1.bf16.msra.mxu0 0
  %120 = vmatprep.subr.bf16.mxu0 0
  %121 = vmatpush1.bf16.msra.mxu0 0
  %122 = vmatprep.subr.bf16.mxu0 0
  %123 = vmatpush1.bf16.msra.mxu0 0
  %124 = vmatprep.subr.bf16.mxu0 0
  %125 = vmatpush1.bf16.msra.mxu0 0
  %126 = vmatprep.subr.bf16.mxu0 0
  %127 = vmatpush1.bf16.msra.mxu0 0
  %128 = vmatprep.subr.bf16.mxu0 0
  %129 = vmatpush1.bf16.msra.mxu0 0
  %130 = vmatprep.subr.bf16.mxu0 0
  %131 = vmatpush1.bf16.msra.mxu0 0
  %132 = vmatprep.subr.bf16.mxu0 0
  %133 = vmatpush1.bf16.msra.mxu0 0
  %134 = vmatprep.subr.bf16.mxu0 0
  %135 = vmatpush1.bf16.msra.mxu0 0
  %136 = vmatprep.subr.bf16.mxu0 0
  %137 = vmatpush1.bf16.msra.mxu0 0
  %138 = vmatprep.subr.bf16.mxu0 0
  %139 = vmatpush1.bf16.msra.mxu0 0
  %140 = vmatprep.subr.bf16.mxu0 0
  %141 = vmatpush1.bf16.msra.mxu0 0
  %142 = vmatprep.mubr.bf16.mxu0 0
  %143 = vmatmul.mubr.bf16.gmra.mrb[0].mxu0 %v87
  %v144 = vpop.f32.mrb[0].mxu0
  %v145 = vadd.f32 %v60, %v144
  %v146 = vpop.f32.mrb[0].mxu0
  %v147 = vpop.f32.mrb[0].mxu0
  %v148 = vadd.f32 %v60, %v147
  %v149 = vpop.f32.mrb[0].mxu0
  %150 = vmatprep.mubr.bf16.mxu0 0
  %151 = vmatmul.mubr.bf16.gmra.mrb[0].mxu0 %v90
  %v152 = vpop.f32.mrb[0].mxu0
  %v153 = vadd.f32 %v60, %v152
  %v154 = vpop.f32.mrb[0].mxu0
  %v155 = vpop.f32.mrb[0].mxu0
  %v156 = vadd.f32 %v60, %v155
  %v157 = vpop.f32.mrb[0].mxu0
  %158 = vmatprep.mubr.bf16.mxu0 0
  %159 = vmatmul.mubr.bf16.gmra.mrb[0].mxu0 %v93
  %v160 = vpop.f32.mrb[0].mxu0
  %v161 = vadd.f32 %v60, %v160
  %v162 = vpop.f32.mrb[0].mxu0
  %v163 = vpop.f32.mrb[0].mxu0
  %v164 = vadd.f32 %v60, %v163
  %v165 = vpop.f32.mrb[0].mxu0
  %166 = vmatprep.mubr.bf16.mxu0 0
  %167 = vmatmul.mubr.bf16.gmra.mrb[0].mxu0 %v96
  %v168 = vpop.f32.mrb[0].mxu0
  %v169 = vadd.f32 %v60, %v168
  %v170 = vpop.f32.mrb[0].mxu0
  %v171 = vpop.f32.mrb[0].mxu0
  %v172 = vadd.f32 %v60, %v171
  %v173 = vpop.f32.mrb[0].mxu0
  %174 = vmatprep.mubr.bf16.mxu0 0
  %175 = vmatmul.mubr.bf16.gmra.mrb[0].mxu0 %v99
  %v176 = vpop.f32.mrb[0].mxu0
  %v177 = vadd.f32 %v60, %v176
  %v178 = vpop.f32.mrb[0].mxu0
  %v179 = vpop.f32.mrb[0].mxu0
  %v180 = vadd.f32 %v60, %v179
  %v181 = vpop.f32.mrb[0].mxu0
  %182 = vmatprep.mubr.bf16.mxu0 0
  %183 = vmatmul.mubr.bf16.gmra.mrb[0].mxu0 %v102
  %v184 = vpop.f32.mrb[0].mxu0
  %v185 = vadd.f32 %v60, %v184
  %v186 = vpop.f32.mrb[0].mxu0
  %v187 = vpop.f32.mrb[0].mxu0
  %v188 = vadd.f32 %v60, %v187
  %v189 = vpop.f32.mrb[0].mxu0
  %190 = vmatprep.mubr.bf16.mxu0 0
  %191 = vmatmul.mubr.bf16.gmra.mrb[0].mxu0 %v105
  %v192 = vpop.f32.mrb[0].mxu0
  %v193 = vadd.f32 %v60, %v192
  %v194 = vpop.f32.mrb[0].mxu0
  %v195 = vpop.f32.mrb[0].mxu0
  %v196 = vadd.f32 %v60, %v195
  %v197 = vpop.f32.mrb[0].mxu0
  %198 = vmatprep.mubr.bf16.mxu0 0
  %199 = vmatmul.mubr.bf16.gmra.mrb[0].mxu0 %v108
  %v200 = vpop.f32.mrb[0].mxu0
  %v201 = vadd.f32 %v60, %v200
  %v202 = vpop.f32.mrb[0].mxu0
  %v203 = vpop.f32.mrb[0].mxu0
  %v204 = vadd.f32 %v60, %v203
  %v205 = vpop.f32.mrb[0].mxu0
  %206 = vdwg.mxu0
  %v207 = vmax.f32 %v145, 0.0
  %v208 = vmax.f32 %v148, 0.0
  %v209 = vmax.f32 %v153, 0.0
  %v210 = vmax.f32 %v156, 0.0
  %v211 = vmax.f32 %v161, 0.0
  %v212 = vmax.f32 %v164, 0.0
  %v213 = vmax.f32 %v169, 0.0
  %v214 = vmax.f32 %v172, 0.0
  %v215 = vmax.f32 %v177, 0.0
  %v216 = vmax.f32 %v180, 0.0
  %v217 = vmax.f32 %v185, 0.0
  %v218 = vmax.f32 %v188, 0.0
  %v219 = vmax.f32 %v193, 0.0
  %v220 = vmax.f32 %v196, 0.0
  %v221 = vmax.f32 %v201, 0.0
  %v222 = vmax.f32 %v204, 0.0
  %v223 = vpack.c.bf16 %v208, %v207
  %v224 = vpack.c.bf16 %v210, %v209
  %v225 = vpack.c.bf16 %v212, %v211
  %v226 = vpack.c.bf16 %v214, %v213
  %v227 = vpack.c.bf16 %v216, %v215
  %v228 = vpack.c.bf16 %v218, %v217
  %v229 = vpack.c.bf16 %v220, %v219
  %v230 = vpack.c.bf16 %v222, %v221
  %v231 = vld [vmem:[%s3] sm:$0xf]
  %v232 = vld [vmem:[%s3 + $0x4] sm:$0xf]
  %v233 = vld [vmem:[%s3 + $0x8] sm:$0xf]
  %v234 = vld [vmem:[%s3 + $0xc] sm:$0xf]
  %v235 = vlaneseq
  %v236 = vshrl.u32 %v235, 7
  %v237 = vsub.s32 1, %v236
  %v238 = vrot.slane %v24, %v237
  %v243 = vunpack.c.l.b16 %v231
  %v244 = vunpack.c.l.b16 %v232
  %v245 = vunpack.c.l.b16 %v233
  %v246 = vunpack.c.l.b16 %v234
  %v247 = vpack.c.b16 %v244, %v243
  %v248 = vpack.c.b16 %v246, %v245
  %vm251 = vcmask 261120
  %v253 = vsel %vm251, %v223, 0
  %v256 = vsel %vm251, %v224, 0
  %v259 = vsel %vm251, %v225, 0
  %v262 = vsel %vm251, %v226, 0
  %v265 = vsel %vm251, %v227, 0
  %v268 = vsel %vm251, %v228, 0
  %v271 = vsel %vm251, %v229, 0
  %v274 = vsel %vm251, %v230, 0
  %276 = vmatprep.subr.bf16.mxu0 0
  %277 = vmatpush1.bf16.msra.mxu0 %v247
  %278 = vmatprep.subr.bf16.mxu0 0
  %279 = vmatpush1.bf16.msra.mxu0 %v248
  %280 = vmatprep.subr.bf16.mxu0 0
  %281 = vmatpush1.bf16.msra.mxu0 0
  %282 = vmatprep.subr.bf16.mxu0 0
  %283 = vmatpush1.bf16.msra.mxu0 0
  %284 = vmatprep.subr.bf16.mxu0 0
  %285 = vmatpush1.bf16.msra.mxu0 0
  %286 = vmatprep.subr.bf16.mxu0 0
  %287 = vmatpush1.bf16.msra.mxu0 0
  %288 = vmatprep.subr.bf16.mxu0 0
  %289 = vmatpush1.bf16.msra.mxu0 0
  %290 = vmatprep.subr.bf16.mxu0 0
  %291 = vmatpush1.bf16.msra.mxu0 0
  %292 = vmatprep.subr.bf16.mxu0 0
  %293 = vmatpush1.bf16.msra.mxu0 0
  %294 = vmatprep.subr.bf16.mxu0 0
  %295 = vmatpush1.bf16.msra.mxu0 0
  %296 = vmatprep.subr.bf16.mxu0 0
  %297 = vmatpush1.bf16.msra.mxu0 0
  %298 = vmatprep.subr.bf16.mxu0 0
  %299 = vmatpush1.bf16.msra.mxu0 0
  %300 = vmatprep.subr.bf16.mxu0 0
  %301 = vmatpush1.bf16.msra.mxu0 0
  %302 = vmatprep.subr.bf16.mxu0 0
  %303 = vmatpush1.bf16.msra.mxu0 0
  %304 = vmatprep.subr.bf16.mxu0 0
  %305 = vmatpush1.bf16.msra.mxu0 0
  %306 = vmatprep.subr.bf16.mxu0 0
  %307 = vmatpush1.bf16.msra.mxu0 0
  %308 = vmatprep.mubr.bf16.mxu0 0
  %309 = vmatmul.mubr.bf16.gmra.mrb[0].mxu0 %v253
  %v310 = vpop.f32.mrb[0].mxu0
  %v311 = vadd.f32 %v238, %v310
  %v312 = vpop.f32.mrb[0].mxu0
  %v313 = vpop.f32.mrb[0].mxu0
  %v314 = vadd.f32 %v238, %v313
  %v315 = vpop.f32.mrb[0].mxu0
  %316 = vmatprep.mubr.bf16.mxu0 0
  %317 = vmatmul.mubr.bf16.gmra.mrb[0].mxu0 %v256
  %v318 = vpop.f32.mrb[0].mxu0
  %v319 = vadd.f32 %v238, %v318
  %v320 = vpop.f32.mrb[0].mxu0
  %v321 = vpop.f32.mrb[0].mxu0
  %v322 = vadd.f32 %v238, %v321
  %v323 = vpop.f32.mrb[0].mxu0
  %324 = vmatprep.mubr.bf16.mxu0 0
  %325 = vmatmul.mubr.bf16.gmra.mrb[0].mxu0 %v259
  %v326 = vpop.f32.mrb[0].mxu0
  %v327 = vadd.f32 %v238, %v326
  %v328 = vpop.f32.mrb[0].mxu0
  %v329 = vpop.f32.mrb[0].mxu0
  %v330 = vadd.f32 %v238, %v329
  %v331 = vpop.f32.mrb[0].mxu0
  %332 = vmatprep.mubr.bf16.mxu0 0
  %333 = vmatmul.mubr.bf16.gmra.mrb[0].mxu0 %v262
  %v334 = vpop.f32.mrb[0].mxu0
  %v335 = vadd.f32 %v238, %v334
  %v336 = vpop.f32.mrb[0].mxu0
  %v337 = vpop.f32.mrb[0].mxu0
  %v338 = vadd.f32 %v238, %v337
  %v339 = vpop.f32.mrb[0].mxu0
  %340 = vmatprep.mubr.bf16.mxu0 0
  %341 = vmatmul.mubr.bf16.gmra.mrb[0].mxu0 %v265
  %v342 = vpop.f32.mrb[0].mxu0
  %v343 = vadd.f32 %v238, %v342
  %v344 = vpop.f32.mrb[0].mxu0
  %v345 = vpop.f32.mrb[0].mxu0
  %v346 = vadd.f32 %v238, %v345
  %v347 = vpop.f32.mrb[0].mxu0
  %348 = vmatprep.mubr.bf16.mxu0 0
  %349 = vmatmul.mubr.bf16.gmra.mrb[0].mxu0 %v268
  %v350 = vpop.f32.mrb[0].mxu0
  %v351 = vadd.f32 %v238, %v350
  %v352 = vpop.f32.mrb[0].mxu0
  %v353 = vpop.f32.mrb[0].mxu0
  %v354 = vadd.f32 %v238, %v353
  %v355 = vpop.f32.mrb[0].mxu0
  %356 = vmatprep.mubr.bf16.mxu0 0
  %357 = vmatmul.mubr.bf16.gmra.mrb[0].mxu0 %v271
  %v358 = vpop.f32.mrb[0].mxu0
  %v359 = vadd.f32 %v238, %v358
  %v360 = vpop.f32.mrb[0].mxu0
  %v361 = vpop.f32.mrb[0].mxu0
  %v362 = vadd.f32 %v238, %v361
  %v363 = vpop.f32.mrb[0].mxu0
  %364 = vmatprep.mubr.bf16.mxu0 0
  %365 = vmatmul.mubr.bf16.gmra.mrb[0].mxu0 %v274
  %v366 = vpop.f32.mrb[0].mxu0
  %v367 = vadd.f32 %v238, %v366
  %v368 = vpop.f32.mrb[0].mxu0
  %v369 = vpop.f32.mrb[0].mxu0
  %v370 = vadd.f32 %v238, %v369
  %v371 = vpop.f32.mrb[0].mxu0
  %372 = vdwg.mxu0
  %v373 = vld [vmem:[%s1] sm:$0xff]
  %v374 = vld [vmem:[%s1 + $0x8] sm:$0xff]
  %v375 = vld [vmem:[%s1 + $0x10] sm:$0xff]
  %v376 = vld [vmem:[%s1 + $0x18] sm:$0xff]
  %v377 = vld [vmem:[%s1 + $0x20] sm:$0xff]
  %v378 = vld [vmem:[%s1 + $0x28] sm:$0xff]
  %v379 = vld [vmem:[%s1 + $0x30] sm:$0xff]
  %v380 = vld [vmem:[%s1 + $0x38] sm:$0xff]
  %v381 = vld [vmem:[%s1 + $0x40] sm:$0xff]
  %v382 = vld [vmem:[%s1 + $0x48] sm:$0xff]
  %v383 = vld [vmem:[%s1 + $0x50] sm:$0xff]
  %v384 = vld [vmem:[%s1 + $0x58] sm:$0xff]
  %v385 = vld [vmem:[%s1 + $0x60] sm:$0xff]
  %v386 = vld [vmem:[%s1 + $0x68] sm:$0xff]
  %v387 = vld [vmem:[%s1 + $0x70] sm:$0xff]
  %v388 = vld [vmem:[%s1 + $0x78] sm:$0xff]
  %v389 = vmul.f32 %v373, 0.01
  %v390 = vmul.f32 %v374, 0.01
  %v391 = vmul.f32 %v375, 0.01
  %v392 = vmul.f32 %v376, 0.01
  %v393 = vmul.f32 %v377, 0.01
  %v394 = vmul.f32 %v378, 0.01
  %v395 = vmul.f32 %v379, 0.01
  %v396 = vmul.f32 %v380, 0.01
  %v397 = vmul.f32 %v381, 0.01
  %v398 = vmul.f32 %v382, 0.01
  %v399 = vmul.f32 %v383, 0.01
  %v400 = vmul.f32 %v384, 0.01
  %v401 = vmul.f32 %v385, 0.01
  %v402 = vmul.f32 %v386, 0.01
  %v403 = vmul.f32 %v387, 0.01
  %v404 = vmul.f32 %v388, 0.01
  %v405 = vmul.f32 %v311, 0.5
  %v406 = vmul.f32 %v314, 0.5
  %v407 = vmul.f32 %v319, 0.5
  %v408 = vmul.f32 %v322, 0.5
  %v409 = vmul.f32 %v327, 0.5
  %v410 = vmul.f32 %v330, 0.5
  %v411 = vmul.f32 %v335, 0.5
  %v412 = vmul.f32 %v338, 0.5
  %v413 = vmul.f32 %v343, 0.5
  %v414 = vmul.f32 %v346, 0.5
  %v415 = vmul.f32 %v351, 0.5
  %v416 = vmul.f32 %v354, 0.5
  %v417 = vmul.f32 %v359, 0.5
  %v418 = vmul.f32 %v362, 0.5
  %v419 = vmul.f32 %v367, 0.5
  %v420 = vmul.f32 %v370, 0.5
  %v421 = vmul.f32 %v405, 1.442695
  %v422 = vpow.pop %v421
  %v423 = vmul.f32 %v406, 1.442695
  %v424 = vpow.pop %v423
  %v425 = vmul.f32 %v407, 1.442695
  %v426 = vpow.pop %v425
  %v427 = vmul.f32 %v408, 1.442695
  %v428 = vpow.pop %v427
  %v429 = vmul.f32 %v409, 1.442695
  %v430 = vpow.pop %v429
  %v431 = vmul.f32 %v410, 1.442695
  %v432 = vpow.pop %v431
  %v433 = vmul.f32 %v411, 1.442695
  %v434 = vpow.pop %v433
  %v435 = vmul.f32 %v412, 1.442695
  %v436 = vpow.pop %v435
  %v437 = vmul.f32 %v413, 1.442695
  %v438 = vpow.pop %v437
  %v439 = vmul.f32 %v414, 1.442695
  %v440 = vpow.pop %v439
  %v441 = vmul.f32 %v415, 1.442695
  %v442 = vpow.pop %v441
  %v443 = vmul.f32 %v416, 1.442695
  %v444 = vpow.pop %v443
  %v445 = vmul.f32 %v417, 1.442695
  %v446 = vpow.pop %v445
  %v447 = vmul.f32 %v418, 1.442695
  %v448 = vpow.pop %v447
  %v449 = vmul.f32 %v419, 1.442695
  %v450 = vpow.pop %v449
  %v451 = vmul.f32 %v420, 1.442695
  %v452 = vpow.pop %v451
  %469 = vrot.lane.b32.xlu0 %v422, 112
  %v470 = vpop.permute.xlu0 %469
  %471 = vrot.lane.b32.xlu0 %v424, 112
  %v472 = vpop.permute.xlu0 %471
  %473 = vrot.lane.b32.xlu0 %v426, 112
  %v474 = vpop.permute.xlu0 %473
  %475 = vrot.lane.b32.xlu0 %v428, 112
  %v476 = vpop.permute.xlu0 %475
  %477 = vrot.lane.b32.xlu0 %v430, 112
  %v478 = vpop.permute.xlu0 %477
  %479 = vrot.lane.b32.xlu0 %v432, 112
  %v480 = vpop.permute.xlu0 %479
  %481 = vrot.lane.b32.xlu0 %v434, 112
  %v482 = vpop.permute.xlu0 %481
  %483 = vrot.lane.b32.xlu0 %v436, 112
  %v484 = vpop.permute.xlu0 %483
  %485 = vrot.lane.b32.xlu0 %v438, 112
  %v486 = vpop.permute.xlu0 %485
  %487 = vrot.lane.b32.xlu0 %v440, 112
  %v488 = vpop.permute.xlu0 %487
  %489 = vrot.lane.b32.xlu0 %v442, 112
  %v490 = vpop.permute.xlu0 %489
  %491 = vrot.lane.b32.xlu0 %v444, 112
  %v492 = vpop.permute.xlu0 %491
  %493 = vrot.lane.b32.xlu0 %v446, 112
  %v494 = vpop.permute.xlu0 %493
  %495 = vrot.lane.b32.xlu0 %v448, 112
  %v496 = vpop.permute.xlu0 %495
  %497 = vrot.lane.b32.xlu0 %v450, 112
  %v498 = vpop.permute.xlu0 %497
  %499 = vrot.lane.b32.xlu0 %v452, 112
  %v500 = vpop.permute.xlu0 %499
  %v517 = vmul.f32 %v389, %v470
  %v518 = vmul.f32 %v390, %v472
  %v519 = vmul.f32 %v391, %v474
  %v520 = vmul.f32 %v392, %v476
  %v521 = vmul.f32 %v393, %v478
  %v522 = vmul.f32 %v394, %v480
  %v523 = vmul.f32 %v395, %v482
  %v524 = vmul.f32 %v396, %v484
  %v525 = vmul.f32 %v397, %v486
  %v526 = vmul.f32 %v398, %v488
  %v527 = vmul.f32 %v399, %v490
  %v528 = vmul.f32 %v400, %v492
  %v529 = vmul.f32 %v401, %v494
  %v530 = vmul.f32 %v402, %v496
  %v531 = vmul.f32 %v403, %v498
  %v532 = vmul.f32 %v404, %v500
  %v533 = vadd.f32 %v311, %v517
  %v534 = vadd.f32 %v314, %v518
  %v535 = vadd.f32 %v319, %v519
  %v536 = vadd.f32 %v322, %v520
  %v537 = vadd.f32 %v327, %v521
  %v538 = vadd.f32 %v330, %v522
  %v539 = vadd.f32 %v335, %v523
  %v540 = vadd.f32 %v338, %v524
  %v541 = vadd.f32 %v343, %v525
  %v542 = vadd.f32 %v346, %v526
  %v543 = vadd.f32 %v351, %v527
  %v544 = vadd.f32 %v354, %v528
  %v545 = vadd.f32 %v359, %v529
  %v546 = vadd.f32 %v362, %v530
  %v547 = vadd.f32 %v367, %v531
  %v548 = vadd.f32 %v370, %v532
  %v549 = vpack.c.bf16 %v534, %v533
  %v550 = vpack.c.bf16 %v536, %v535
  %v551 = vpack.c.bf16 %v538, %v537
  %v552 = vpack.c.bf16 %v540, %v539
  %v553 = vpack.c.bf16 %v542, %v541
  %v554 = vpack.c.bf16 %v544, %v543
  %v555 = vpack.c.bf16 %v546, %v545
  %v556 = vpack.c.bf16 %v548, %v547
  %v557 = vld [vmem:[%s4] sm:$0xf]
  %v558 = vld [vmem:[%s4 + $0x4] sm:$0xf]
  %v559 = vlaneseq
  %v560 = vshrl.u32 %v559, 7
  %v561 = vsub.s32 2, %v560
  %v562 = vrot.slane %v24, %v561
  %v565 = vunpack.c.l.b16 %v557
  %v566 = vunpack.c.l.b16 %v558
  %v567 = vpack.c.b16 %v566, %v565
  %vm569 = vcmask 130048
  %v571 = vsel %vm569, %v549, 0
  %v574 = vsel %vm569, %v550, 0
  %v577 = vsel %vm569, %v551, 0
  %v580 = vsel %vm569, %v552, 0
  %v583 = vsel %vm569, %v553, 0
  %v586 = vsel %vm569, %v554, 0
  %v589 = vsel %vm569, %v555, 0
  %v592 = vsel %vm569, %v556, 0
  %594 = vmatprep.subr.bf16.mxu0 0
  %595 = vmatpush1.bf16.msra.mxu0 %v567
  %596 = vmatprep.subr.bf16.mxu0 0
  %597 = vmatpush1.bf16.msra.mxu0 0
  %598 = vmatprep.subr.bf16.mxu0 0
  %599 = vmatpush1.bf16.msra.mxu0 0
  %600 = vmatprep.subr.bf16.mxu0 0
  %601 = vmatpush1.bf16.msra.mxu0 0
  %602 = vmatprep.subr.bf16.mxu0 0
  %603 = vmatpush1.bf16.msra.mxu0 0
  %604 = vmatprep.subr.bf16.mxu0 0
  %605 = vmatpush1.bf16.msra.mxu0 0
  %606 = vmatprep.subr.bf16.mxu0 0
  %607 = vmatpush1.bf16.msra.mxu0 0
  %608 = vmatprep.subr.bf16.mxu0 0
  %609 = vmatpush1.bf16.msra.mxu0 0
  %610 = vmatprep.subr.bf16.mxu0 0
  %611 = vmatpush1.bf16.msra.mxu0 0
  %612 = vmatprep.subr.bf16.mxu0 0
  %613 = vmatpush1.bf16.msra.mxu0 0
  %614 = vmatprep.subr.bf16.mxu0 0
  %615 = vmatpush1.bf16.msra.mxu0 0
  %616 = vmatprep.subr.bf16.mxu0 0
  %617 = vmatpush1.bf16.msra.mxu0 0
  %618 = vmatprep.subr.bf16.mxu0 0
  %619 = vmatpush1.bf16.msra.mxu0 0
  %620 = vmatprep.subr.bf16.mxu0 0
  %621 = vmatpush1.bf16.msra.mxu0 0
  %622 = vmatprep.subr.bf16.mxu0 0
  %623 = vmatpush1.bf16.msra.mxu0 0
  %624 = vmatprep.subr.bf16.mxu0 0
  %625 = vmatpush1.bf16.msra.mxu0 0
  %626 = vmatprep.mubr.bf16.mxu0 0
  %627 = vmatmul.mubr.bf16.gmra.mrb[0].mxu0 %v571
  %v628 = vpop.f32.mrb[0].mxu0
  %v629 = vadd.f32 %v562, %v628
  %v630 = vpop.f32.mrb[0].mxu0
  %v631 = vpop.f32.mrb[0].mxu0
  %v632 = vadd.f32 %v562, %v631
  %v633 = vpop.f32.mrb[0].mxu0
  %634 = vmatprep.mubr.bf16.mxu0 0
  %635 = vmatmul.mubr.bf16.gmra.mrb[0].mxu0 %v574
  %v636 = vpop.f32.mrb[0].mxu0
  %v637 = vadd.f32 %v562, %v636
  %v638 = vpop.f32.mrb[0].mxu0
  %v639 = vpop.f32.mrb[0].mxu0
  %v640 = vadd.f32 %v562, %v639
  %v641 = vpop.f32.mrb[0].mxu0
  %642 = vmatprep.mubr.bf16.mxu0 0
  %643 = vmatmul.mubr.bf16.gmra.mrb[0].mxu0 %v577
  %v644 = vpop.f32.mrb[0].mxu0
  %v645 = vadd.f32 %v562, %v644
  %v646 = vpop.f32.mrb[0].mxu0
  %v647 = vpop.f32.mrb[0].mxu0
  %v648 = vadd.f32 %v562, %v647
  %v649 = vpop.f32.mrb[0].mxu0
  %650 = vmatprep.mubr.bf16.mxu0 0
  %651 = vmatmul.mubr.bf16.gmra.mrb[0].mxu0 %v580
  %v652 = vpop.f32.mrb[0].mxu0
  %v653 = vadd.f32 %v562, %v652
  %v654 = vpop.f32.mrb[0].mxu0
  %v655 = vpop.f32.mrb[0].mxu0
  %v656 = vadd.f32 %v562, %v655
  %v657 = vpop.f32.mrb[0].mxu0
  %658 = vmatprep.mubr.bf16.mxu0 0
  %659 = vmatmul.mubr.bf16.gmra.mrb[0].mxu0 %v583
  %v660 = vpop.f32.mrb[0].mxu0
  %v661 = vadd.f32 %v562, %v660
  %v662 = vpop.f32.mrb[0].mxu0
  %v663 = vpop.f32.mrb[0].mxu0
  %v664 = vadd.f32 %v562, %v663
  %v665 = vpop.f32.mrb[0].mxu0
  %666 = vmatprep.mubr.bf16.mxu0 0
  %667 = vmatmul.mubr.bf16.gmra.mrb[0].mxu0 %v586
  %v668 = vpop.f32.mrb[0].mxu0
  %v669 = vadd.f32 %v562, %v668
  %v670 = vpop.f32.mrb[0].mxu0
  %v671 = vpop.f32.mrb[0].mxu0
  %v672 = vadd.f32 %v562, %v671
  %v673 = vpop.f32.mrb[0].mxu0
  %674 = vmatprep.mubr.bf16.mxu0 0
  %675 = vmatmul.mubr.bf16.gmra.mrb[0].mxu0 %v589
  %v676 = vpop.f32.mrb[0].mxu0
  %v677 = vadd.f32 %v562, %v676
  %v678 = vpop.f32.mrb[0].mxu0
  %v679 = vpop.f32.mrb[0].mxu0
  %v680 = vadd.f32 %v562, %v679
  %v681 = vpop.f32.mrb[0].mxu0
  %682 = vmatprep.mubr.bf16.mxu0 0
  %683 = vmatmul.mubr.bf16.gmra.mrb[0].mxu0 %v592
  %v684 = vpop.f32.mrb[0].mxu0
  %v685 = vadd.f32 %v562, %v684
  %v686 = vpop.f32.mrb[0].mxu0
  %v687 = vpop.f32.mrb[0].mxu0
  %v688 = vadd.f32 %v562, %v687
  %v689 = vpop.f32.mrb[0].mxu0
  %690 = vdwg.mxu0
  %707 = vrot.lane.b32.xlu0 %v311, 64
  %v708 = vpop.permute.xlu0 %707
  %709 = vrot.lane.b32.xlu0 %v314, 64
  %v710 = vpop.permute.xlu0 %709
  %711 = vrot.lane.b32.xlu0 %v319, 64
  %v712 = vpop.permute.xlu0 %711
  %713 = vrot.lane.b32.xlu0 %v322, 64
  %v714 = vpop.permute.xlu0 %713
  %715 = vrot.lane.b32.xlu0 %v327, 64
  %v716 = vpop.permute.xlu0 %715
  %717 = vrot.lane.b32.xlu0 %v330, 64
  %v718 = vpop.permute.xlu0 %717
  %719 = vrot.lane.b32.xlu0 %v335, 64
  %v720 = vpop.permute.xlu0 %719
  %721 = vrot.lane.b32.xlu0 %v338, 64
  %v722 = vpop.permute.xlu0 %721
  %723 = vrot.lane.b32.xlu0 %v343, 64
  %v724 = vpop.permute.xlu0 %723
  %725 = vrot.lane.b32.xlu0 %v346, 64
  %v726 = vpop.permute.xlu0 %725
  %727 = vrot.lane.b32.xlu0 %v351, 64
  %v728 = vpop.permute.xlu0 %727
  %729 = vrot.lane.b32.xlu0 %v354, 64
  %v730 = vpop.permute.xlu0 %729
  %731 = vrot.lane.b32.xlu0 %v359, 64
  %v732 = vpop.permute.xlu0 %731
  %733 = vrot.lane.b32.xlu0 %v362, 64
  %v734 = vpop.permute.xlu0 %733
  %735 = vrot.lane.b32.xlu0 %v367, 64
  %v736 = vpop.permute.xlu0 %735
  %737 = vrot.lane.b32.xlu0 %v370, 64
  %v738 = vpop.permute.xlu0 %737
  %v755 = vsel %vm85, %v629, %v708
  %v756 = vsel %vm85, %v632, %v710
  %v757 = vsel %vm85, %v637, %v712
  %v758 = vsel %vm85, %v640, %v714
  %v759 = vsel %vm85, %v645, %v716
  %v760 = vsel %vm85, %v648, %v718
  %v761 = vsel %vm85, %v653, %v720
  %v762 = vsel %vm85, %v656, %v722
  %v763 = vsel %vm85, %v661, %v724
  %v764 = vsel %vm85, %v664, %v726
  %v765 = vsel %vm85, %v669, %v728
  %v766 = vsel %vm85, %v672, %v730
  %v767 = vsel %vm85, %v677, %v732
  %v768 = vsel %vm85, %v680, %v734
  %v769 = vsel %vm85, %v685, %v736
  %v770 = vsel %vm85, %v688, %v738
  %vm771 = vcmask 785408
  %v772 = vsel %vm771, %v755, 0.0
  %v773 = vsel %vm771, %v756, 0.0
  %v774 = vsel %vm771, %v757, 0.0
  %v775 = vsel %vm771, %v758, 0.0
  %v776 = vsel %vm771, %v759, 0.0
  %v777 = vsel %vm771, %v760, 0.0
  %v778 = vsel %vm771, %v761, 0.0
  %v779 = vsel %vm771, %v762, 0.0
  %v780 = vsel %vm771, %v763, 0.0
  %v781 = vsel %vm771, %v764, 0.0
  %v782 = vsel %vm771, %v765, 0.0
  %v783 = vsel %vm771, %v766, 0.0
  %v784 = vsel %vm771, %v767, 0.0
  %v785 = vsel %vm771, %v768, 0.0
  %v786 = vsel %vm771, %v769, 0.0
  %v787 = vsel %vm771, %v770, 0.0
  %788 = vst [vmem:[%s6] sm:$0xff] %v772
  %789 = vst [vmem:[%s6 + $0x8] sm:$0xff] %v773
  %790 = vst [vmem:[%s6 + $0x10] sm:$0xff] %v774
  %791 = vst [vmem:[%s6 + $0x18] sm:$0xff] %v775
  %792 = vst [vmem:[%s6 + $0x20] sm:$0xff] %v776
  %793 = vst [vmem:[%s6 + $0x28] sm:$0xff] %v777
  %794 = vst [vmem:[%s6 + $0x30] sm:$0xff] %v778
  %795 = vst [vmem:[%s6 + $0x38] sm:$0xff] %v779
  %796 = vst [vmem:[%s6 + $0x40] sm:$0xff] %v780
  %797 = vst [vmem:[%s6 + $0x48] sm:$0xff] %v781
  %798 = vst [vmem:[%s6 + $0x50] sm:$0xff] %v782
  %799 = vst [vmem:[%s6 + $0x58] sm:$0xff] %v783
  %800 = vst [vmem:[%s6 + $0x60] sm:$0xff] %v784
  %801 = vst [vmem:[%s6 + $0x68] sm:$0xff] %v785
  %802 = vst [vmem:[%s6 + $0x70] sm:$0xff] %v786
  %803 = vst [vmem:[%s6 + $0x78] sm:$0xff] %v787
  // Predicated region
  $region26: #{vae_head_forward.1} parent=0 // pred_check
    _
  $region27: #{vae_head_forward.1} parent=0 // pred_check_branch
    %805 = sbr.rel (0) target = $region29
  $region28: #{vae_head_forward.1} parent=0 // pred_region
    _
  $region29: #{vae_head_forward.1} parent=0 // pred_fallthru
    _
  // Predicated region
  $region30: #{vae_head_forward.1} parent=0 // pred_check
    _
  $region31: #{vae_head_forward.1} parent=0 // pred_check_branch
    %807 = sbr.rel (0) target = $region33
  $region32: #{vae_head_forward.1} parent=0 // pred_region
    _
  $region33: #{vae_head_forward.1} parent=0 // pred_fallthru
    _

</llo_original>
